<compile_context>
chip_gen: v7x
topology: tpu7x:2x2x1
jax: 0.10.0
libtpu: 0.0.40
codegen_flags: <defaults>
</compile_context>

<pallas_src>
import functools

import numpy as np
import jax
import jax.numpy as jnp
from jax import lax
from jax.experimental import pallas as pl
from jax.experimental.pallas import tpu as pltpu


# ----------------------------- Pallas kernel -------------------------------
def _conv_block_kernel(x_ref, w_ref, b_ref, o_ref, *, Nb, H, KH, OH, WC,
                       pad, stride, pad_mode, act):
    """One grid step = Nb images stacked along the M (sublane) axis.

    x_ref: (Nb, H, W*Cin)         raw (unpadded) activation rows (compute dtype)
    w_ref: (KH*W*Cin, OW*OC)      merged banded conv weight (compute dtype)
    b_ref: (1, OW*OC)             bias tiled across OW (f32, lane-dense)
    o_ref: (Nb*OH, OW*OC)         lane-dense output slab
    """
    x = x_ref[...]                                        # (Nb, H, WC)

    # ---- row padding fused in VMEM (reflect or zeros, static slices) ----
    if pad > 0:
        if pad_mode == "reflect":
            top = [x[:, r:r + 1, :] for r in range(pad, 0, -1)]
            bot = [x[:, r:r + 1, :] for r in range(H - 2, H - 2 - pad, -1)]
        else:  # zeros
            z = jnp.zeros((Nb, pad, WC), x.dtype)
            top, bot = [z], [z]
        xp = jnp.concatenate(top + [x] + bot, axis=1)     # (Nb, H + 2*pad, WC)
    else:
        xp = x

    # ---- merged-K LHS: KH shifted row windows concatenated along lanes ----
    bands = [xp[:, ki: ki + stride * (OH - 1) + 1: stride, :]   # (Nb, OH, WC)
             for ki in range(KH)]
    lhs = bands[0] if KH == 1 else jnp.concatenate(bands, axis=2)
    lhs = lhs.reshape(Nb * OH, KH * WC)                   # (M, K)

    # ---- single MXU matmul (bf16 operands, f32 accumulation) ----
    acc = jnp.dot(lhs, w_ref[...], preferred_element_type=jnp.float32)
    acc = acc + b_ref[...].astype(jnp.float32)            # bias added once

    # ---- fused activation ----
    if act == "relu":
        acc = jnp.maximum(acc, 0.0)
    elif act == "lrelu":
        acc = jnp.where(acc > 0, acc, 0.2 * acc)
    elif act == "tanh":
        acc = jnp.tanh(acc)
    elif act != "none":
        raise ValueError(f"unsupported act: {act}")

    o_ref[...] = acc.astype(o_ref.dtype)


# ------------------------- weight preprocessing -----------------------------
def _normalize_pad_mode(padding_mode):
    if padding_mode == "reflect":
        return "reflect"
    assert padding_mode in ("zeros", "constant"), \
        f"unsupported padding_mode: {padding_mode}"
    return "zeros"


def _build_banded_weight(weight, W, OW, pad, stride, pad_mode):
    """weight (OC, Cin, KH, KW) -> merged banded weight (KH*W*Cin, OW*OC).

    Row index = ki*(W*Cin) + col*Cin + c over the *unpadded* input columns;
    column padding (reflect or zeros) is folded in by remapping/dropping
    out-of-range taps.  Pure host-side preprocessing.
    """
    OC, Cin, KH, KW = weight.shape
    S = np.zeros((KW, OW, W), np.float32)
    for kj in range(KW):
        for ow in range(OW):
            col = ow * stride + kj - pad
            if 0 <= col < W:
                S[kj, ow, col] += 1.0
            elif pad_mode == "reflect":
                col = -col if col < 0 else 2 * (W - 1) - col
                S[kj, ow, col] += 1.0
            # zeros-padding: out-of-range taps contribute nothing
    w_t = jnp.transpose(jnp.asarray(weight), (2, 3, 1, 0))   # (KH, KW, Cin, OC)
    Wb = jnp.einsum("ijco,jwl->ilcwo", w_t, jnp.asarray(S),
                    precision=lax.Precision.HIGHEST)         # exact selection
    return Wb.reshape(KH * W * Cin, OW * OC)


def prepare_conv_block_params(weight, bias, *, W, stride, padding,
                              padding_mode="reflect",
                              compute_dtype=jnp.bfloat16):
    """Host-side; call ONCE per parameter set (hoisted out of the forward)."""
    pad_mode = _normalize_pad_mode(padding_mode)
    OC, Cin, KH, KW = weight.shape
    OW = (W + 2 * padding - KW) // stride + 1
    Wb = _build_banded_weight(weight, W, OW, padding, stride, pad_mode)
    Wb = Wb.astype(compute_dtype)                            # (KH*W*Cin, OW*OC)
    b_tiled = jnp.tile(jnp.asarray(bias, jnp.float32), OW).reshape(1, OW * OC)
    return Wb, b_tiled


# ------------------------------ forward (NHWC) ------------------------------
def _pick_images_per_step(N, OH, m_target=256):
    """Largest divisor Nb of N with Nb*OH <= m_target (>=1).
    m_target ~128 on v5e, ~256 on v6e/v7x (MXU row depth)."""
    best = 1
    for nb in range(1, N + 1):
        if N % nb == 0 and nb * OH <= m_target:
            best = nb
    return best


def conv_block_forward_nhwc(x_nhwc, Wb, b_tiled, *, OC, KH, stride, padding,
                            padding_mode="reflect", act="relu",
                            images_per_step=None):
    """ConvBlock forward on NHWC input with precomputed banded params."""
    N, H, W, Cin = x_nhwc.shape
    pad_mode = _normalize_pad_mode(padding_mode)
    OH = (H + 2 * padding - KH) // stride + 1
    WC = W * Cin
    OWOC = Wb.shape[1]
    OW = OWOC // OC
    assert Wb.shape[0] == KH * WC
    if pad_mode == "reflect":
        assert padding < H and padding < W, "reflect padding requires pad < H, W"

    Nb = images_per_step or _pick_images_per_step(N, OH)
    assert N % Nb == 0
    grid = (N // Nb,)

    x = x_nhwc.reshape(N, H, WC).astype(Wb.dtype)   # free collapse + bf16 cast

    kernel = functools.partial(
        _conv_block_kernel, Nb=Nb, H=H, KH=KH, OH=OH, WC=WC,
        pad=padding, stride=stride, pad_mode=pad_mode, act=act)

    out = pl.pallas_call(
        kernel,
        out_shape=jax.ShapeDtypeStruct((N * OH, OWOC), x_nhwc.dtype),
        grid_spec=pltpu.PrefetchScalarGridSpec(
            num_scalar_prefetch=0,
            grid=grid,
            in_specs=[
                pl.BlockSpec((Nb, H, WC), lambda g: (g, 0, 0)),
                pl.BlockSpec((KH * WC, OWOC), lambda g: (0, 0)),
                pl.BlockSpec((1, OWOC), lambda g: (0, 0)),
            ],
            out_specs=pl.BlockSpec((Nb * OH, OWOC), lambda g: (g, 0)),
        ),
        compiler_params=pltpu.CompilerParams(
            dimension_semantics=("parallel",)),
    )(x, Wb, b_tiled)

    # TODO(synk): for production-sized W, add an OW-tile grid axis (weight spec
    # indexed lambda g,j:(0,j)) with a narrowed K window per tile and an
    # explicit vmem_limit_bytes so the banded weight fits v7x's 64 MiB VMEM.
    return out.reshape(N, OH, OW, OC)


# ------------------------------ forward (NCHW) ------------------------------
def conv_block_forward(x_nchw, weight, bias, *, stride, padding,
                       padding_mode="reflect", act="relu",
                       compute_dtype=jnp.bfloat16, prepared=None):
    """PyTorch-compatible NCHW API.  Pass `prepared=prepare_conv_block_params(...)`
    to hoist the banded-weight build out of the per-call forward."""
    N, Cin, H, W = x_nchw.shape
    OC, _, KH, KW = weight.shape
    if prepared is None:
        prepared = prepare_conv_block_params(
            weight, bias, W=W, stride=stride, padding=padding,
            padding_mode=padding_mode, compute_dtype=compute_dtype)
    Wb, b_tiled = prepared
    x_nhwc = jnp.transpose(x_nchw, (0, 2, 3, 1))
    y = conv_block_forward_nhwc(x_nhwc, Wb, b_tiled, OC=OC, KH=KH,
                                stride=stride, padding=padding,
                                padding_mode=padding_mode, act=act)
    return jnp.transpose(y, (0, 3, 1, 2))
    # TODO(synk): norm='bn'/'in' not implemented (module default norm='none').
    # TODO(synk): dropout not implemented (module default apply_dropout=False).


# --------------------------------- main -------------------------------------
if __name__ == "__main__":
    key = jax.random.PRNGKey(0)
    k_x, k_w, k_b = jax.random.split(key, 3)

    # ConvBlock(in_channels=4, out_channels=8, kernel_size=3, stride=1,
    #           padding=1, padding_mode='reflect', act='relu', norm='none')
    N, Cin, H, W = 2, 4, 16, 16
    OC, KH, KW = 8, 3, 3
    stride, padding = 1, 1

    x = jax.random.normal(k_x, (N, Cin, H, W), dtype=jnp.float32)
    weight = jax.random.normal(k_w, (OC, Cin, KH, KW), dtype=jnp.float32) * 0.1
    bias = jax.random.normal(k_b, (OC,), dtype=jnp.float32) * 0.1

    # Hoisted parameter preprocessing: runs once, outside the jitted forward.
    Wb, b_tiled = prepare_conv_block_params(
        weight, bias, W=W, stride=stride, padding=padding,
        padding_mode="reflect", compute_dtype=jnp.bfloat16)
    Wb = jax.block_until_ready(Wb)
    b_tiled = jax.block_until_ready(b_tiled)

    @jax.jit
    def fwd(x_nchw, Wb_, b_tiled_):
        x_nhwc = jnp.transpose(x_nchw, (0, 2, 3, 1))
        y = conv_block_forward_nhwc(x_nhwc, Wb_, b_tiled_, OC=OC, KH=KH,
                                    stride=stride, padding=padding,
                                    padding_mode="reflect", act="relu")
        return jnp.transpose(y, (0, 3, 1, 2))

    y = jax.block_until_ready(fwd(x, Wb, b_tiled))

    # Reference: reflect pad + conv + bias + relu computed by XLA in f32 on
    # bf16-rounded operands (matches the kernel's bf16-operand / f32-accum MXU).
    x_q = x.astype(jnp.bfloat16).astype(jnp.float32)
    w_q = weight.astype(jnp.bfloat16).astype(jnp.float32)
    x_pad = jnp.pad(x_q, ((0, 0), (0, 0), (padding, padding), (padding, padding)),
                    mode="reflect")
    y_ref = lax.conv_general_dilated(
        x_pad, w_q, window_strides=(stride, stride), padding="VALID",
        dimension_numbers=("NCHW", "OIHW", "NCHW"))
    y_ref = jnp.maximum(y_ref + bias.reshape(1, OC, 1, 1), 0.0)
    assert y.shape == y_ref.shape == (N, OC, H, W)
    max_err = float(jnp.max(jnp.abs(y - y_ref)))
    assert max_err < 1e-2, max_err

    print("KERNEL_OK")
</pallas_src>

<mosaic_0001>
module attributes {stable_mosaic.version = 11 : i64} {
  func.func @_conv_block_kernel(%arg0: i32, %arg1: memref<2x16x64xbf16, #tpu.memory_space<vmem>>, %arg2: memref<192x128xbf16, #tpu.memory_space<vmem>>, %arg3: memref<1x128xf32, #tpu.memory_space<vmem>>, %arg4: memref<32x128xf32, #tpu.memory_space<vmem>>) attributes {dimension_semantics = [#tpu.dimension_semantics<parallel>], iteration_bounds = array<i64: 1>, scalar_prefetch = 0 : i64, scratch_operands = 0 : i64, tpu.core_type = #tpu.core_type<tc>, window_params = [{transform_indices = @transform_0, window_bounds = array<i64: 2, 16, 64>}, {pipeline_mode = #tpu.pipeline_mode<synchronous>, transform_indices = @transform_1, window_bounds = array<i64: 192, 128>}, {pipeline_mode = #tpu.pipeline_mode<synchronous>, transform_indices = @transform_2, window_bounds = array<i64: 1, 128>}, {transform_indices = @transform_3, window_bounds = array<i64: 32, 128>}]} {
    %c0 = arith.constant 0 : index
    %c0_0 = arith.constant 0 : index
    %c0_1 = arith.constant 0 : index
    %0 = vector.load %arg1[%c0, %c0_0, %c0_1] : memref<2x16x64xbf16, #tpu.memory_space<vmem>>, vector<2x16x64xbf16>
    %1 = vector.extract_strided_slice %0 {offsets = [0, 1, 0], sizes = [2, 1, 64], strides = [1, 1, 1]} : vector<2x16x64xbf16> to vector<2x1x64xbf16>
    %2 = vector.extract_strided_slice %0 {offsets = [0, 14, 0], sizes = [2, 1, 64], strides = [1, 1, 1]} : vector<2x16x64xbf16> to vector<2x1x64xbf16>
    %3 = tpu.concatenate %1, %0, %2 in 1 : vector<2x1x64xbf16>, vector<2x16x64xbf16>, vector<2x1x64xbf16> -> vector<2x18x64xbf16>
    %4 = vector.extract_strided_slice %3 {offsets = [0, 0, 0], sizes = [2, 16, 64], strides = [1, 1, 1]} : vector<2x18x64xbf16> to vector<2x16x64xbf16>
    %5 = vector.extract_strided_slice %3 {offsets = [0, 1, 0], sizes = [2, 16, 64], strides = [1, 1, 1]} : vector<2x18x64xbf16> to vector<2x16x64xbf16>
    %6 = vector.extract_strided_slice %3 {offsets = [0, 2, 0], sizes = [2, 16, 64], strides = [1, 1, 1]} : vector<2x18x64xbf16> to vector<2x16x64xbf16>
    %7 = tpu.concatenate %4, %5, %6 in 2 : vector<2x16x64xbf16>, vector<2x16x64xbf16>, vector<2x16x64xbf16> -> vector<2x16x192xbf16>
    %8 = vector.shape_cast %7 : vector<2x16x192xbf16> to vector<32x192xbf16>
    %c0_2 = arith.constant 0 : index
    %c0_3 = arith.constant 0 : index
    %9 = vector.load %arg2[%c0_2, %c0_3] : memref<192x128xbf16, #tpu.memory_space<vmem>>, vector<192x128xbf16>
    %cst = arith.constant dense<0.000000e+00> : vector<32x128xf32>
    %10 = tpu.matmul %8, %9, %cst {dimension_numbers = #tpu.dot_dimension_numbers<[1], [0], [0], [1], [0, 0, 1, 1], [], []>} : vector<32x192xbf16>, vector<192x128xbf16>, vector<32x128xf32> -> vector<32x128xf32>
    %c0_4 = arith.constant 0 : index
    %c0_5 = arith.constant 0 : index
    %11 = vector.load %arg3[%c0_4, %c0_5] : memref<1x128xf32, #tpu.memory_space<vmem>>, vector<1x128xf32>
    %12 = vector.broadcast %11 : vector<1x128xf32> to vector<32x128xf32>
    %13 = arith.addf %10, %12 : vector<32x128xf32>
    %cst_6 = arith.constant 0.000000e+00 : f32
    %14 = vector.broadcast %cst_6 : f32 to vector<32x128xf32>
    %15 = arith.maximumf %13, %14 : vector<32x128xf32>
    %c0_7 = arith.constant 0 : index
    %c0_8 = arith.constant 0 : index
    %16 = vector.load %arg4[%c0_7, %c0_8] : memref<32x128xf32, #tpu.memory_space<vmem>>, vector<32x128xf32>
    tpu.vector_store %arg4[%c0_7, %c0_8], %15 {strides = array<i32>} : memref<32x128xf32, #tpu.memory_space<vmem>>, vector<32x128xf32>,
    return
  }
  func.func @transform_0(%arg0: i32) -> (i32, i32, i32) {
    %c0_i32 = arith.constant 0 : i32
    %c0_i32_0 = arith.constant 0 : i32
    %c0_i32_1 = arith.constant 0 : i32
    return %arg0, %c0_i32, %c0_i32_0 : i32, i32, i32
  }
  func.func @transform_1(%arg0: i32) -> (i32, i32) {
    %c0_i32 = arith.constant 0 : i32
    %c0_i32_0 = arith.constant 0 : i32
    %c0_i32_1 = arith.constant 0 : i32
    return %c0_i32, %c0_i32_0 : i32, i32
  }
  func.func @transform_2(%arg0: i32) -> (i32, i32) {
    %c0_i32 = arith.constant 0 : i32
    %c0_i32_0 = arith.constant 0 : i32
    %c0_i32_1 = arith.constant 0 : i32
    return %c0_i32, %c0_i32_0 : i32, i32
  }
  func.func @transform_3(%arg0: i32) -> (i32, i32) {
    %c0_i32 = arith.constant 0 : i32
    %c0_i32_0 = arith.constant 0 : i32
    return %arg0, %c0_i32 : i32, i32
  }
}

</mosaic_0001>

<llo_original>
// kernel: fwd.1
$region0: #{fwd.1}
  #allocation0 [shape = 'u32[]', space=smem, size = 0x4, offset = 0x4, fixed_abs, tag = 'smem constant byte address 0x4 - core index']
  #allocation1 [shape = 'u32[144,128]{1,0:T(1,128)}', space=vmem, size = 0x12000, scoped, tag = 'internal scratch']
  %s0 = inlined_call_operand.vmem [shape: bf16[2,16,64], index: 0, kind: input, shape index: {}]
  %s1 = inlined_call_operand.vmem [shape: bf16[192,128], index: 1, kind: input, shape index: {}]
  %s2 = inlined_call_operand.vmem [shape: f32[1,128], index: 2, kind: input, shape index: {}]
  %s3 = inlined_call_operand.vmem [shape: f32[32,128], index: 3, kind: output, shape index: {}]
  %s4 = sld [smem:[#allocation0]]
  $region22: #{fwd.1} parent=0
    _
  %s6 = ssub.s32 1, %s4
  %s7 = scalar_select 0, %s6, %s4
  // Predicated region
  $region2: #{fwd.1} parent=0 // pred_check
    _
  $region3: #{fwd.1} parent=0 // pred_check_branch
    %9 = sbr.rel (0) target = $region5
  $region4: #{fwd.1} parent=0 // pred_region
    _
  $region5: #{fwd.1} parent=0 // pred_fallthru
    _
  // Predicated region
  $region6: #{fwd.1} parent=0 // pred_check
    _
  $region7: #{fwd.1} parent=0 // pred_check_branch
    %11 = sbr.rel (0) target = $region9
  $region8: #{fwd.1} parent=0 // pred_region
    _
  $region9: #{fwd.1} parent=0 // pred_fallthru
    _
  // Predicated region
  $region10: #{fwd.1} parent=0 // pred_check
    _
  $region11: #{fwd.1} parent=0 // pred_check_branch
    %13 = sbr.rel (0) target = $region13
  $region12: #{fwd.1} parent=0 // pred_region
    _
  $region13: #{fwd.1} parent=0 // pred_fallthru
    _
  %v15 = vld [vmem:[%s0] sm:$0xf]
  %v16 = vld [vmem:[%s0 + $0x4] sm:$0xf]
  %v17 = vld [vmem:[%s0 + $0x8] sm:$0xf]
  %v18 = vld [vmem:[%s0 + $0xc] sm:$0xf]
  %v21 = vunpack.c.l.b16 %v15
  %v22 = vunpack.c.l.b16 %v17
  %v23 = vpack.c.b16 %v21, %v21
  %v24 = vpack.c.b16 %v22, %v22
  %v26 = vshrl.u32 %v23, 16
  %v29 = vshrl.u32 %v24, 16
  %v35 = vunpack.c.l.b16 %v16
  %v36 = vunpack.c.l.b16 %v18
  %v37 = vpack.c.b16 %v35, %v21
  %v38 = vpack.c.b16 %v36, %v22
  %v40 = vshrl.u32 %v37, 16
  %v42 = vrot.slane %v40, 7
  %v43 = vshll.u32 %v37, 16
  %v45 = vor.u32 %v42, %v43
  %v47 = vshrl.u32 %v38, 16
  %v49 = vrot.slane %v47, 7
  %v50 = vshll.u32 %v38, 16
  %v52 = vor.u32 %v49, %v50
  %v57 = vpack.c.b16 %v35, %v35
  %v58 = vpack.c.b16 %v36, %v36
  %v60 = vshll.u32 %v57, 16
  %v62 = vrot.slane %v60, 3
  %v64 = vshll.u32 %v58, 16
  %v66 = vrot.slane %v64, 3
  %vm69 = vcmask 1040384
  %vm70 = vsmask.f32 256
  %vm71 = vmand %vm69, %vm70
  %v72 = vsel %vm71, %v26, %v45
  %v73 = vsel %vm71, %v29, %v52
  %v74 = vsel %vm71, %v42, %v62
  %v75 = vsel %vm71, %v49, %v66
  %vm76 = vsmask.f32 7424
  %v78 = vshrl.u32 %v72, 16
  %v80 = vshll.u32 %v72, 16
  %v82 = vrot.slane %v80, 1
  %v83 = vor.u32 %v78, %v82
  %v85 = vshll.u32 %v74, 16
  %v87 = vrot.slane %v85, 1
  %v88 = vsel %vm76, %v83, %v87
  %v90 = vshrl.u32 %v73, 16
  %v92 = vshll.u32 %v73, 16
  %v94 = vrot.slane %v92, 1
  %v95 = vor.u32 %v90, %v94
  %v97 = vshll.u32 %v75, 16
  %v99 = vrot.slane %v97, 1
  %v100 = vsel %vm76, %v95, %v99
  %101 = vrot.lane.b32.xlu0 %v88, 64
  %v102 = vpop.permute.xlu0 %101
  %103 = vrot.lane.b32.xlu0 %v100, 64
  %v104 = vpop.permute.xlu0 %103
  %vm109 = vcmask 1046528
  %v110 = vrot.slane %v72, 1
  %v111 = vrot.slane %v74, 1
  %v112 = vsel %vm109, %v110, %v111
  %v113 = vrot.slane %v73, 1
  %v114 = vrot.slane %v75, 1
  %v115 = vsel %vm109, %v113, %v114
  %vm116 = vcmask 523264
  %v118 = vsel %vm116, %v72, %v102
  %v121 = vsel %vm116, %v73, %v104
  %v123 = vld [vmem:[%s1] sm:$0xf]
  %v124 = vld [vmem:[%s1 + $0x4] sm:$0xf]
  %v125 = vld [vmem:[%s1 + $0x8] sm:$0xf]
  %v126 = vld [vmem:[%s1 + $0xc] sm:$0xf]
  %v127 = vld [vmem:[%s1 + $0x10] sm:$0xf]
  %v128 = vld [vmem:[%s1 + $0x14] sm:$0xf]
  %v129 = vld [vmem:[%s1 + $0x18] sm:$0xf]
  %v130 = vld [vmem:[%s1 + $0x1c] sm:$0xf]
  %v131 = vld [vmem:[%s1 + $0x20] sm:$0xf]
  %v132 = vld [vmem:[%s1 + $0x24] sm:$0xf]
  %v133 = vld [vmem:[%s1 + $0x28] sm:$0xf]
  %v134 = vld [vmem:[%s1 + $0x2c] sm:$0xf]
  %v135 = vld [vmem:[%s1 + $0x30] sm:$0xf]
  %v136 = vld [vmem:[%s1 + $0x34] sm:$0xf]
  %v137 = vld [vmem:[%s1 + $0x38] sm:$0xf]
  %v138 = vld [vmem:[%s1 + $0x3c] sm:$0xf]
  %v139 = vld [vmem:[%s1 + $0x40] sm:$0xf]
  %v140 = vld [vmem:[%s1 + $0x44] sm:$0xf]
  %v141 = vld [vmem:[%s1 + $0x48] sm:$0xf]
  %v142 = vld [vmem:[%s1 + $0x4c] sm:$0xf]
  %v143 = vld [vmem:[%s1 + $0x50] sm:$0xf]
  %v144 = vld [vmem:[%s1 + $0x54] sm:$0xf]
  %v145 = vld [vmem:[%s1 + $0x58] sm:$0xf]
  %v146 = vld [vmem:[%s1 + $0x5c] sm:$0xf]
  %v147 = vld [vmem:[%s2] sm:$0x1]
  %v149 = vlaneseq
  %v150 = vshrl.u32 %v149, 7
  %v151 = vsub.s32 0, %v150
  %v152 = vrot.slane %v147, %v151
  %v178 = vunpack.c.l.b16 %v123
  %v179 = vunpack.c.l.b16 %v124
  %v180 = vunpack.c.l.b16 %v125
  %v181 = vunpack.c.l.b16 %v126
  %v182 = vunpack.c.l.b16 %v127
  %v183 = vunpack.c.l.b16 %v128
  %v184 = vunpack.c.l.b16 %v129
  %v185 = vunpack.c.l.b16 %v130
  %v186 = vunpack.c.l.b16 %v131
  %v187 = vunpack.c.l.b16 %v132
  %v188 = vunpack.c.l.b16 %v133
  %v189 = vunpack.c.l.b16 %v134
  %v190 = vunpack.c.l.b16 %v135
  %v191 = vunpack.c.l.b16 %v136
  %v192 = vunpack.c.l.b16 %v137
  %v193 = vunpack.c.l.b16 %v138
  %v194 = vunpack.c.l.b16 %v139
  %v195 = vunpack.c.l.b16 %v140
  %v196 = vunpack.c.l.b16 %v141
  %v197 = vunpack.c.l.b16 %v142
  %v198 = vunpack.c.l.b16 %v143
  %v199 = vunpack.c.l.b16 %v144
  %v200 = vunpack.c.l.b16 %v145
  %v201 = vunpack.c.l.b16 %v146
  %v202 = vpack.c.b16 %v179, %v178
  %v203 = vpack.c.b16 %v181, %v180
  %v204 = vpack.c.b16 %v183, %v182
  %v205 = vpack.c.b16 %v185, %v184
  %v206 = vpack.c.b16 %v187, %v186
  %v207 = vpack.c.b16 %v189, %v188
  %v208 = vpack.c.b16 %v191, %v190
  %v209 = vpack.c.b16 %v193, %v192
  %v210 = vpack.c.b16 %v195, %v194
  %v211 = vpack.c.b16 %v197, %v196
  %v212 = vpack.c.b16 %v199, %v198
  %v213 = vpack.c.b16 %v201, %v200
  %v227 = vsel %vm116, %v112, 0
  %v230 = vsel %vm116, %v115, 0
  %232 = vmatprep.subr.bf16.mxu0 0
  %233 = vmatpush1.bf16.msra.mxu0 %v202
  %234 = vmatprep.subr.bf16.mxu0 0
  %235 = vmatpush1.bf16.msra.mxu0 %v203
  %236 = vmatprep.subr.bf16.mxu0 0
  %237 = vmatpush1.bf16.msra.mxu0 %v204
  %238 = vmatprep.subr.bf16.mxu0 0
  %239 = vmatpush1.bf16.msra.mxu0 %v205
  %240 = vmatprep.subr.bf16.mxu0 0
  %241 = vmatpush1.bf16.msra.mxu0 %v206
  %242 = vmatprep.subr.bf16.mxu0 0
  %243 = vmatpush1.bf16.msra.mxu0 %v207
  %244 = vmatprep.subr.bf16.mxu0 0
  %245 = vmatpush1.bf16.msra.mxu0 %v208
  %246 = vmatprep.subr.bf16.mxu0 0
  %247 = vmatpush1.bf16.msra.mxu0 %v209
  %248 = vmatprep.subr.bf16.mxu0 0
  %249 = vmatpush1.bf16.msra.mxu0 %v210
  %250 = vmatprep.subr.bf16.mxu0 0
  %251 = vmatpush1.bf16.msra.mxu0 %v211
  %252 = vmatprep.subr.bf16.mxu0 0
  %253 = vmatpush1.bf16.msra.mxu0 %v212
  %254 = vmatprep.subr.bf16.mxu0 0
  %255 = vmatpush1.bf16.msra.mxu0 %v213
  %256 = vmatprep.subr.bf16.mxu0 0
  %257 = vmatpush1.bf16.msra.mxu0 0
  %258 = vmatprep.subr.bf16.mxu0 0
  %259 = vmatpush1.bf16.msra.mxu0 0
  %260 = vmatprep.subr.bf16.mxu0 0
  %261 = vmatpush1.bf16.msra.mxu0 0
  %262 = vmatprep.subr.bf16.mxu0 0
  %263 = vmatpush1.bf16.msra.mxu0 0
  %264 = vmatprep.mubr.bf16.mxu0 %v227
  %265 = vmatmul.mubr.bf16.gmra.mrb[0].mxu0 %v118
  %v266 = vpop.f32.mrb[0].mxu0
  %v267 = vadd.f32 %v152, %v266
  %v268 = vpop.f32.mrb[0].mxu0
  %v269 = vpop.f32.mrb[0].mxu0
  %v270 = vadd.f32 %v152, %v269
  %v271 = vpop.f32.mrb[0].mxu0
  %272 = vmatprep.mubr.bf16.mxu0 %v230
  %273 = vmatmul.mubr.bf16.gmra.mrb[0].mxu0 %v121
  %v274 = vpop.f32.mrb[0].mxu0
  %v275 = vadd.f32 %v152, %v274
  %v276 = vpop.f32.mrb[0].mxu0
  %v277 = vpop.f32.mrb[0].mxu0
  %v278 = vadd.f32 %v152, %v277
  %v279 = vpop.f32.mrb[0].mxu0
  %280 = vdwg.mxu0
  %v281 = vmax.f32 %v267, 0.0
  %v282 = vmax.f32 %v270, 0.0
  %v283 = vmax.f32 %v275, 0.0
  %v284 = vmax.f32 %v278, 0.0
  %285 = vst [vmem:[%s3] sm:$0xff] %v281
  %286 = vst [vmem:[%s3 + $0x8] sm:$0xff] %v282
  %287 = vst [vmem:[%s3 + $0x10] sm:$0xff] %v283
  %288 = vst [vmem:[%s3 + $0x18] sm:$0xff] %v284
  // Predicated region
  $region14: #{fwd.1} parent=0 // pred_check
    _
  $region15: #{fwd.1} parent=0 // pred_check_branch
    %290 = sbr.rel (0) target = $region17
  $region16: #{fwd.1} parent=0 // pred_region
    _
  $region17: #{fwd.1} parent=0 // pred_fallthru
    _
  // Predicated region
  $region18: #{fwd.1} parent=0 // pred_check
    _
  $region19: #{fwd.1} parent=0 // pred_check_branch
    %292 = sbr.rel (0) target = $region21
  $region20: #{fwd.1} parent=0 // pred_region
    _
  $region21: #{fwd.1} parent=0 // pred_fallthru
    _

</llo_original>
